<compile_context>
chip_gen: v6e
topology: v6e:2x2x1
jax: 0.10.0
libtpu: 0.0.40
codegen_flags: <defaults>
</compile_context>

<pallas_src>
import jax
import jax.numpy as jnp
import numpy as np
from jax import lax
from jax.experimental import pallas as pl
from jax.experimental.pallas import tpu as pltpu


def _round_up(a: int, m: int) -> int:
    return -(-a // m) * m


def _make_kernel(num_classes: int, row_chunk: int, compute_dtype):
    """Builds the kernel for a fixed class count / inner row-chunk / math dtype."""
    unroll_classes = num_classes <= 32   # fully unroll small heads; fori_loop for COCO-scale

    def kernel(x_ref, o_ref):
        # x_ref: (C, tile_r, L) channel-major input block;  o_ref: (6, tile_r, L).
        odt = o_ref.dtype
        cdt = compute_dtype
        n_chunks = x_ref.shape[1] // row_chunk   # tile_r is a multiple of row_chunk

        def chunk_body(r, carry):
            r0 = pl.multiple_of(r * row_chunk, row_chunk)
            sl = pl.ds(r0, row_chunk)

            # ---- box transform: cx,cy,w,h -> x1,y1,x2,y2 (the 4x4 convert
            # matrix is exactly these four multiply-adds).  Operands hoisted.
            cx = x_ref[0, sl].astype(cdt)
            cy = x_ref[1, sl].astype(cdt)
            hw = x_ref[2, sl].astype(cdt) * 0.5
            hh = x_ref[3, sl].astype(cdt) * 0.5
            o_ref[0, sl] = (cx - hw).astype(odt)
            o_ref[1, sl] = (cy - hh).astype(odt)
            o_ref[2, sl] = (cx + hw).astype(odt)
            o_ref[3, sl] = (cy + hh).astype(odt)

            # ---- fused running max / argmax over class channels, carried in
            # vreg-resident locals (1 load, 0 stores per class).  First index
            # wins ties, like torch.max.
            m = x_ref[5, sl].astype(cdt)
            idx = jnp.zeros(m.shape, jnp.int32)

            def class_step(c, mi):
                m, idx = mi
                v = x_ref[5 + c, sl].astype(cdt)
                gt = v > m
                idx = jnp.where(gt, c, idx)
                m = jnp.maximum(v, m)
                return m, idx

            if unroll_classes:
                for c in range(1, num_classes):
                    m, idx = class_step(c, (m, idx))
            else:
                m, idx = lax.fori_loop(1, num_classes, class_step, (m, idx),
                                       unroll=4)

            obj = x_ref[4, sl].astype(cdt)
            o_ref[4, sl] = (m * obj).astype(odt)     # scores = class max * objectness
            o_ref[5, sl] = idx.astype(odt)           # labels -> output dtype
            return carry

        lax.fori_loop(0, n_chunks, chunk_body, 0)

    return kernel


def deepstream_output(x, *, lane_width: int = 512, tile_bytes: int | None = None):
    """x: (B, N, 5 + num_classes).  Returns (B, N, 6); same semantics as the
    PyTorch DeepStreamOutput module."""
    B, N, C = x.shape
    assert C > 5, "need at least one class channel"
    assert lane_width % 128 == 0
    num_classes = C - 5
    M = B * N
    itemsize = jnp.dtype(x.dtype).itemsize

    # ---- chip-dependent defaults --------------------------------------------
    kind = ""
    try:
        kind = jax.devices()[0].device_kind.lower()
    except Exception:
        pass
    is_v7 = ("v7" in kind) or ("tpu7" in kind)
    has_bf16_vpu = is_v7 or ("v6" in kind)
    if tile_bytes is None:
        # Larger steps on v7x (3.2 TB/s HBM makes per-step overhead relatively
        # more expensive); 8 MiB elsewhere.  VMEM-checked below.
        tile_bytes = (12 << 20) if is_v7 else (8 << 20)
    compute_dtype = (jnp.bfloat16
                     if (x.dtype == jnp.bfloat16 and has_bf16_vpu)
                     else jnp.float32)

    # ---- lane-dense tiling over the flattened anchor axis --------------------
    L = min(lane_width, _round_up(M, 128))
    r_min = -(-M // L)                                 # rows needed for all anchors

    # Inner row chunk: ~8 f32 vregs per live array so the running max/argmax
    # (and the per-class channel load) stay in registers across the class loop.
    row_chunk = max(8, _round_up(max(1, 8192 // L), 8))

    # Rows per grid step: ~tile_bytes of input, a multiple of row_chunk,
    # clamped so double-buffered in+out blocks stay well under VMEM.
    rows = max(row_chunk, tile_bytes // (C * L * itemsize))
    vmem_row_cap = (48 << 20) // (2 * (C + 6) * L * itemsize)
    rows = min(rows, max(row_chunk, vmem_row_cap))
    tile_r = min(_round_up(rows, row_chunk), _round_up(r_min, row_chunk))

    # Keep the grid-step count even (when >1) so the two v7x TensorCores split
    # the "parallel" axis without an idle tail.
    steps = -(-r_min // tile_r)
    if steps > 1 and steps % 2 == 1:
        tile_r = _round_up(-(-r_min // (steps + 1)), row_chunk)
        steps = -(-r_min // tile_r)
    R = steps * tile_r
    grid = (steps,)

    in_tile_bytes = C * tile_r * L * itemsize
    out_tile_bytes = 6 * tile_r * L * itemsize
    vmem_limit = int(min(max(2 * (in_tile_bytes + out_tile_bytes) + (4 << 20),
                             32 << 20),
                         56 << 20))   # never size against 128 MiB; v7x has 64 MiB/TC

    # ---- wrapper-side relayout (B, N, C) -> (C, R, L), zero-padded ------------
    # TODO(synk): fuse this relayout (and the inverse below) into the
    # producer/consumer of the export graph instead of separate XLA passes.
    xt = jnp.transpose(x, (2, 0, 1)).reshape(C, M)
    pad = R * L - M
    if pad:
        xt = jnp.pad(xt, ((0, 0), (0, pad)))
    xr = xt.reshape(C, R, L)

    kernel = _make_kernel(num_classes, row_chunk, compute_dtype)

    out = pl.pallas_call(
        kernel,
        out_shape=jax.ShapeDtypeStruct((6, R, L), x.dtype),
        grid_spec=pltpu.PrefetchScalarGridSpec(
            num_scalar_prefetch=0,
            grid=grid,
            in_specs=[pl.BlockSpec((C, tile_r, L), lambda i: (0, i, 0))],
            out_specs=pl.BlockSpec((6, tile_r, L), lambda i: (0, i, 0)),
        ),
        compiler_params=pltpu.CompilerParams(
            dimension_semantics=("parallel",),
            vmem_limit_bytes=vmem_limit),
    )(xr)

    # ---- back to the module's (B, N, 6) layout --------------------------------
    out = out.reshape(6, R * L)[:, :M].reshape(6, B, N)
    return jnp.transpose(out, (1, 2, 0))


def _reference(x):
    cm = jnp.array([[1.0, 0.0, 1.0, 0.0],
                    [0.0, 1.0, 0.0, 1.0],
                    [-0.5, 0.0, 0.5, 0.0],
                    [0.0, -0.5, 0.0, 0.5]], dtype=x.dtype)
    boxes = x[:, :, :4] @ cm
    obj = x[:, :, 4:5]
    cls = x[:, :, 5:]
    scores = jnp.max(cls, axis=-1, keepdims=True) * obj
    labels = jnp.argmax(cls, axis=-1, keepdims=True).astype(x.dtype)
    return jnp.concatenate([boxes, scores, labels], axis=-1)


if __name__ == "__main__":
    key = jax.random.PRNGKey(0)
    # (batch, anchors, num_classes, tile_bytes override).  Covers:
    #  - small single-step grids,
    #  - zero-padded ragged tail + multi-step grid (forced small tiles),
    #  - the lax.fori_loop class path (80 classes).
    configs = [
        (2, 1024, 8, None),
        (3, 1000, 20, None),
        (2, 8400, 15, 1 << 20),
        (1, 2048, 80, None),
    ]
    for i, (B, N, NC, tb) in enumerate(configs):
        k = jax.random.fold_in(key, i)
        x = jax.random.uniform(k, (B, N, 5 + NC), dtype=jnp.float32)
        kwargs = {} if tb is None else {"tile_bytes": tb}
        out = jax.block_until_ready(deepstream_output(x, **kwargs))
        ref = jax.block_until_ready(_reference(x))
        assert out.shape == (B, N, 6)
        np.testing.assert_allclose(np.asarray(out), np.asarray(ref),
                                   rtol=1e-5, atol=1e-5)
    print("KERNEL_OK")
</pallas_src>

<mosaic_0001>
module attributes {stable_mosaic.version = 11 : i64} {
  func.func @kernel(%arg0: i32, %arg1: memref<13x16x512xf32, #tpu.memory_space<vmem>>, %arg2: memref<6x16x512xf32, #tpu.memory_space<vmem>>) attributes {dimension_semantics = [#tpu.dimension_semantics<parallel>], iteration_bounds = array<i64: 1>, scalar_prefetch = 0 : i64, scratch_operands = 0 : i64, tpu.core_type = #tpu.core_type<tc>, window_params = [{transform_indices = @transform_0, window_bounds = array<i64: 13, 16, 512>}, {transform_indices = @transform_1, window_bounds = array<i64: 6, 16, 512>}]} {
    %c0_i32 = arith.constant 0 : i32
    %c16_i32 = arith.constant 16 : i32
    %0 = arith.muli %c0_i32, %c16_i32 : i32
    %1 = tpu.assume_multiple %0, 16 : i32
    %c0 = arith.constant 0 : index
    %2 = arith.index_cast %1 : i32 to index
    %c0_0 = arith.constant 0 : index
    %3 = vector.load %arg1[%c0, %2, %c0_0] : memref<13x16x512xf32, #tpu.memory_space<vmem>>, vector<1x16x512xf32>
    %4 = vector.shape_cast %3 : vector<1x16x512xf32> to vector<16x512xf32>
    %c1 = arith.constant 1 : index
    %5 = arith.index_cast %1 : i32 to index
    %c0_1 = arith.constant 0 : index
    %6 = vector.load %arg1[%c1, %5, %c0_1] : memref<13x16x512xf32, #tpu.memory_space<vmem>>, vector<1x16x512xf32>
    %7 = vector.shape_cast %6 : vector<1x16x512xf32> to vector<16x512xf32>
    %c2 = arith.constant 2 : index
    %8 = arith.index_cast %1 : i32 to index
    %c0_2 = arith.constant 0 : index
    %9 = vector.load %arg1[%c2, %8, %c0_2] : memref<13x16x512xf32, #tpu.memory_space<vmem>>, vector<1x16x512xf32>
    %10 = vector.shape_cast %9 : vector<1x16x512xf32> to vector<16x512xf32>
    %cst = arith.constant 5.000000e-01 : f32
    %11 = vector.broadcast %cst : f32 to vector<16x512xf32>
    %12 = arith.mulf %10, %11 : vector<16x512xf32>
    %c3 = arith.constant 3 : index
    %13 = arith.index_cast %1 : i32 to index
    %c0_3 = arith.constant 0 : index
    %14 = vector.load %arg1[%c3, %13, %c0_3] : memref<13x16x512xf32, #tpu.memory_space<vmem>>, vector<1x16x512xf32>
    %15 = vector.shape_cast %14 : vector<1x16x512xf32> to vector<16x512xf32>
    %cst_4 = arith.constant 5.000000e-01 : f32
    %16 = vector.broadcast %cst_4 : f32 to vector<16x512xf32>
    %17 = arith.mulf %15, %16 : vector<16x512xf32>
    %18 = arith.subf %4, %12 : vector<16x512xf32>
    %c0_5 = arith.constant 0 : index
    %19 = arith.index_cast %1 : i32 to index
    %c0_6 = arith.constant 0 : index
    %20 = vector.load %arg2[%c0_5, %19, %c0_6] : memref<6x16x512xf32, #tpu.memory_space<vmem>>, vector<1x16x512xf32>
    %21 = vector.shape_cast %20 : vector<1x16x512xf32> to vector<16x512xf32>
    %22 = vector.shape_cast %18 : vector<16x512xf32> to vector<1x16x512xf32>
    tpu.vector_store %arg2[%c0_5, %19, %c0_6], %22 {strides = array<i32>} : memref<6x16x512xf32, #tpu.memory_space<vmem>>, vector<1x16x512xf32>,
    %23 = arith.subf %7, %17 : vector<16x512xf32>
    %c1_7 = arith.constant 1 : index
    %24 = arith.index_cast %1 : i32 to index
    %c0_8 = arith.constant 0 : index
    %25 = vector.load %arg2[%c1_7, %24, %c0_8] : memref<6x16x512xf32, #tpu.memory_space<vmem>>, vector<1x16x512xf32>
    %26 = vector.shape_cast %25 : vector<1x16x512xf32> to vector<16x512xf32>
    %27 = vector.shape_cast %23 : vector<16x512xf32> to vector<1x16x512xf32>
    tpu.vector_store %arg2[%c1_7, %24, %c0_8], %27 {strides = array<i32>} : memref<6x16x512xf32, #tpu.memory_space<vmem>>, vector<1x16x512xf32>,
    %28 = arith.addf %4, %12 : vector<16x512xf32>
    %c2_9 = arith.constant 2 : index
    %29 = arith.index_cast %1 : i32 to index
    %c0_10 = arith.constant 0 : index
    %30 = vector.load %arg2[%c2_9, %29, %c0_10] : memref<6x16x512xf32, #tpu.memory_space<vmem>>, vector<1x16x512xf32>
    %31 = vector.shape_cast %30 : vector<1x16x512xf32> to vector<16x512xf32>
    %32 = vector.shape_cast %28 : vector<16x512xf32> to vector<1x16x512xf32>
    tpu.vector_store %arg2[%c2_9, %29, %c0_10], %32 {strides = array<i32>} : memref<6x16x512xf32, #tpu.memory_space<vmem>>, vector<1x16x512xf32>,
    %33 = arith.addf %7, %17 : vector<16x512xf32>
    %c3_11 = arith.constant 3 : index
    %34 = arith.index_cast %1 : i32 to index
    %c0_12 = arith.constant 0 : index
    %35 = vector.load %arg2[%c3_11, %34, %c0_12] : memref<6x16x512xf32, #tpu.memory_space<vmem>>, vector<1x16x512xf32>
    %36 = vector.shape_cast %35 : vector<1x16x512xf32> to vector<16x512xf32>
    %37 = vector.shape_cast %33 : vector<16x512xf32> to vector<1x16x512xf32>
    tpu.vector_store %arg2[%c3_11, %34, %c0_12], %37 {strides = array<i32>} : memref<6x16x512xf32, #tpu.memory_space<vmem>>, vector<1x16x512xf32>,
    %c5 = arith.constant 5 : index
    %38 = arith.index_cast %1 : i32 to index
    %c0_13 = arith.constant 0 : index
    %39 = vector.load %arg1[%c5, %38, %c0_13] : memref<13x16x512xf32, #tpu.memory_space<vmem>>, vector<1x16x512xf32>
    %40 = vector.shape_cast %39 : vector<1x16x512xf32> to vector<16x512xf32>
    %c0_i32_14 = arith.constant 0 : i32
    %41 = vector.broadcast %c0_i32_14 : i32 to vector<16x512xi32>
    %c6 = arith.constant 6 : index
    %42 = arith.index_cast %1 : i32 to index
    %c0_15 = arith.constant 0 : index
    %43 = vector.load %arg1[%c6, %42, %c0_15] : memref<13x16x512xf32, #tpu.memory_space<vmem>>, vector<1x16x512xf32>
    %44 = vector.shape_cast %43 : vector<1x16x512xf32> to vector<16x512xf32>
    %45 = arith.cmpf ogt, %44, %40 : vector<16x512xf32>
    %c1_i32 = arith.constant 1 : i32
    %46 = vector.broadcast %c1_i32 : i32 to vector<16x512xi32>
    %47 = arith.select %45, %46, %41 : vector<16x512xi1>, vector<16x512xi32>
    %48 = arith.maximumf %44, %40 : vector<16x512xf32>
    %c7 = arith.constant 7 : index
    %49 = arith.index_cast %1 : i32 to index
    %c0_16 = arith.constant 0 : index
    %50 = vector.load %arg1[%c7, %49, %c0_16] : memref<13x16x512xf32, #tpu.memory_space<vmem>>, vector<1x16x512xf32>
    %51 = vector.shape_cast %50 : vector<1x16x512xf32> to vector<16x512xf32>
    %52 = arith.cmpf ogt, %51, %48 : vector<16x512xf32>
    %c2_i32 = arith.constant 2 : i32
    %53 = vector.broadcast %c2_i32 : i32 to vector<16x512xi32>
    %54 = arith.select %52, %53, %47 : vector<16x512xi1>, vector<16x512xi32>
    %55 = arith.maximumf %51, %48 : vector<16x512xf32>
    %c8 = arith.constant 8 : index
    %56 = arith.index_cast %1 : i32 to index
    %c0_17 = arith.constant 0 : index
    %57 = vector.load %arg1[%c8, %56, %c0_17] : memref<13x16x512xf32, #tpu.memory_space<vmem>>, vector<1x16x512xf32>
    %58 = vector.shape_cast %57 : vector<1x16x512xf32> to vector<16x512xf32>
    %59 = arith.cmpf ogt, %58, %55 : vector<16x512xf32>
    %c3_i32 = arith.constant 3 : i32
    %60 = vector.broadcast %c3_i32 : i32 to vector<16x512xi32>
    %61 = arith.select %59, %60, %54 : vector<16x512xi1>, vector<16x512xi32>
    %62 = arith.maximumf %58, %55 : vector<16x512xf32>
    %c9 = arith.constant 9 : index
    %63 = arith.index_cast %1 : i32 to index
    %c0_18 = arith.constant 0 : index
    %64 = vector.load %arg1[%c9, %63, %c0_18] : memref<13x16x512xf32, #tpu.memory_space<vmem>>, vector<1x16x512xf32>
    %65 = vector.shape_cast %64 : vector<1x16x512xf32> to vector<16x512xf32>
    %66 = arith.cmpf ogt, %65, %62 : vector<16x512xf32>
    %c4_i32 = arith.constant 4 : i32
    %67 = vector.broadcast %c4_i32 : i32 to vector<16x512xi32>
    %68 = arith.select %66, %67, %61 : vector<16x512xi1>, vector<16x512xi32>
    %69 = arith.maximumf %65, %62 : vector<16x512xf32>
    %c10 = arith.constant 10 : index
    %70 = arith.index_cast %1 : i32 to index
    %c0_19 = arith.constant 0 : index
    %71 = vector.load %arg1[%c10, %70, %c0_19] : memref<13x16x512xf32, #tpu.memory_space<vmem>>, vector<1x16x512xf32>
    %72 = vector.shape_cast %71 : vector<1x16x512xf32> to vector<16x512xf32>
    %73 = arith.cmpf ogt, %72, %69 : vector<16x512xf32>
    %c5_i32 = arith.constant 5 : i32
    %74 = vector.broadcast %c5_i32 : i32 to vector<16x512xi32>
    %75 = arith.select %73, %74, %68 : vector<16x512xi1>, vector<16x512xi32>
    %76 = arith.maximumf %72, %69 : vector<16x512xf32>
    %c11 = arith.constant 11 : index
    %77 = arith.index_cast %1 : i32 to index
    %c0_20 = arith.constant 0 : index
    %78 = vector.load %arg1[%c11, %77, %c0_20] : memref<13x16x512xf32, #tpu.memory_space<vmem>>, vector<1x16x512xf32>
    %79 = vector.shape_cast %78 : vector<1x16x512xf32> to vector<16x512xf32>
    %80 = arith.cmpf ogt, %79, %76 : vector<16x512xf32>
    %c6_i32 = arith.constant 6 : i32
    %81 = vector.broadcast %c6_i32 : i32 to vector<16x512xi32>
    %82 = arith.select %80, %81, %75 : vector<16x512xi1>, vector<16x512xi32>
    %83 = arith.maximumf %79, %76 : vector<16x512xf32>
    %c12 = arith.constant 12 : index
    %84 = arith.index_cast %1 : i32 to index
    %c0_21 = arith.constant 0 : index
    %85 = vector.load %arg1[%c12, %84, %c0_21] : memref<13x16x512xf32, #tpu.memory_space<vmem>>, vector<1x16x512xf32>
    %86 = vector.shape_cast %85 : vector<1x16x512xf32> to vector<16x512xf32>
    %87 = arith.cmpf ogt, %86, %83 : vector<16x512xf32>
    %c7_i32 = arith.constant 7 : i32
    %88 = vector.broadcast %c7_i32 : i32 to vector<16x512xi32>
    %89 = arith.select %87, %88, %82 : vector<16x512xi1>, vector<16x512xi32>
    %90 = arith.maximumf %86, %83 : vector<16x512xf32>
    %c4 = arith.constant 4 : index
    %91 = arith.index_cast %1 : i32 to index
    %c0_22 = arith.constant 0 : index
    %92 = vector.load %arg1[%c4, %91, %c0_22] : memref<13x16x512xf32, #tpu.memory_space<vmem>>, vector<1x16x512xf32>
    %93 = vector.shape_cast %92 : vector<1x16x512xf32> to vector<16x512xf32>
    %94 = arith.mulf %90, %93 : vector<16x512xf32>
    %c4_23 = arith.constant 4 : index
    %95 = arith.index_cast %1 : i32 to index
    %c0_24 = arith.constant 0 : index
    %96 = vector.load %arg2[%c4_23, %95, %c0_24] : memref<6x16x512xf32, #tpu.memory_space<vmem>>, vector<1x16x512xf32>
    %97 = vector.shape_cast %96 : vector<1x16x512xf32> to vector<16x512xf32>
    %98 = vector.shape_cast %94 : vector<16x512xf32> to vector<1x16x512xf32>
    tpu.vector_store %arg2[%c4_23, %95, %c0_24], %98 {strides = array<i32>} : memref<6x16x512xf32, #tpu.memory_space<vmem>>, vector<1x16x512xf32>,
    %99 = arith.sitofp %89 : vector<16x512xi32> to vector<16x512xf32>
    %c5_25 = arith.constant 5 : index
    %100 = arith.index_cast %1 : i32 to index
    %c0_26 = arith.constant 0 : index
    %101 = vector.load %arg2[%c5_25, %100, %c0_26] : memref<6x16x512xf32, #tpu.memory_space<vmem>>, vector<1x16x512xf32>
    %102 = vector.shape_cast %101 : vector<1x16x512xf32> to vector<16x512xf32>
    %103 = vector.shape_cast %99 : vector<16x512xf32> to vector<1x16x512xf32>
    tpu.vector_store %arg2[%c5_25, %100, %c0_26], %103 {strides = array<i32>} : memref<6x16x512xf32, #tpu.memory_space<vmem>>, vector<1x16x512xf32>,
    %c1_i32_27 = arith.constant 1 : i32
    return
  }
  func.func @transform_0(%arg0: i32) -> (i32, i32, i32) {
    %c0_i32 = arith.constant 0 : i32
    %c0_i32_0 = arith.constant 0 : i32
    %c0_i32_1 = arith.constant 0 : i32
    return %c0_i32, %arg0, %c0_i32_0 : i32, i32, i32
  }
  func.func @transform_1(%arg0: i32) -> (i32, i32, i32) {
    %c0_i32 = arith.constant 0 : i32
    %c0_i32_0 = arith.constant 0 : i32
    %c0_i32_1 = arith.constant 0 : i32
    return %c0_i32, %arg0, %c0_i32_0 : i32, i32, i32
  }
}

</mosaic_0001>

<llo_original>
// kernel: tpu_custom_call.1
$region0: #{tpu_custom_call.1}
  #allocation0 [shape = 'u32[]', space=smem, size = 0x4, offset = 0x4, fixed_abs, tag = 'smem constant byte address 0x4 - core index']
  #allocation1 [shape = 'u32[144,128]{1,0:T(1,128)}', space=vmem, size = 0x12000, scoped, tag = 'internal scratch']
  %s0 = inlined_call_operand.hbm [shape: f32[13,16,512], index: 0, kind: input, shape index: {}]
  %s1 = inlined_call_operand.hbm [shape: f32[6,16,512], index: 1, kind: output, shape index: {}]
  %s2 = sld [smem:[#allocation0]]
  $region18: #{tpu_custom_call.1} parent=0
    _
  %s4 = ssub.s32 1, %s2
  %s5 = scalar_select 0, %s4, %s2
  $region1: #{tpu_custom_call.1} parent=0
    #allocation2 [shape = 'u8[425984]{0}', space=vmem, size = 0x68000, scoped, tag = 'input window, operand 0, single buffered']
    #allocation3 [shape = 's32[1]{0}', space=sflag, size = 0x4, scoped, tag = 'scoped memory for tpu_custom_call.1']
    #allocation4 [shape = 's32[1]{0}', space=sflag, size = 0x4, scoped, tag = 'scoped memory for tpu_custom_call.1']
    #allocation5 [shape = 'u8[196608]{0}', space=vmem, size = 0x30000, scoped, tag = 'output window, operand 0, single buffered']
    %6 = vsyncpa [#allocation3], 0
    %7 = vsyncpa [#allocation4], 0
    // Predicated region
    $region2: #{tpu_custom_call.1} parent=1 // pred_check
      _
    $region3: #{tpu_custom_call.1} parent=1 // pred_check_branch
      %9 = sbr.rel (0) target = $region5
    $region4: #{tpu_custom_call.1} parent=1 // pred_region
      %s11 = ssub.s32 13312, 13312
      %12 = vsyncadd [#allocation3], %s11
      %s13 = sshll.u32 [#allocation2], 4
      %s14 = int_to_ptr.vmem [resolvable:$true] %s13
      %19 = dma.hbm_to_vmem [thread:$0]  %s0, 13312, %s14, [#allocation3], 512, 512, 32
    $region5: #{tpu_custom_call.1} parent=1 // pred_fallthru
      _
    // Predicated region
    $region6: #{tpu_custom_call.1} parent=1 // pred_check
      _
    $region7: #{tpu_custom_call.1} parent=1 // pred_check_branch
      %21 = sbr.rel (0) target = $region9
    $region8: #{tpu_custom_call.1} parent=1 // pred_region
      %22 = dma.done [#allocation3], 13312
    $region9: #{tpu_custom_call.1} parent=1 // pred_fallthru
      _
    %s23 = smul.u32 0, 4
    %s24 = smul.addr %s23, 8
    %s25 = scalar_lea.vmem [#allocation2], %s24
    %v26 = vld [vmem:[%s25] sm:$0xff]
    %v27 = vld [vmem:[%s25 + $0x8] sm:$0xff]
    %v28 = vld [vmem:[%s25 + $0x10] sm:$0xff]
    %v29 = vld [vmem:[%s25 + $0x18] sm:$0xff]
    %v30 = vld [vmem:[%s25 + $0x20] sm:$0xff]
    %v31 = vld [vmem:[%s25 + $0x28] sm:$0xff]
    %v32 = vld [vmem:[%s25 + $0x30] sm:$0xff]
    %v33 = vld [vmem:[%s25 + $0x38] sm:$0xff]
    %s34 = sadd.s32 %s23, 8
    %s35 = smul.addr %s34, 8
    %s36 = scalar_lea.vmem [#allocation2], %s35
    %v37 = vld [vmem:[%s36] sm:$0xff]
    %v38 = vld [vmem:[%s36 + $0x8] sm:$0xff]
    %v39 = vld [vmem:[%s36 + $0x10] sm:$0xff]
    %v40 = vld [vmem:[%s36 + $0x18] sm:$0xff]
    %v41 = vld [vmem:[%s36 + $0x20] sm:$0xff]
    %v42 = vld [vmem:[%s36 + $0x28] sm:$0xff]
    %v43 = vld [vmem:[%s36 + $0x30] sm:$0xff]
    %v44 = vld [vmem:[%s36 + $0x38] sm:$0xff]
    %s45 = sadd.s32 %s23, 16
    %s46 = smul.addr %s45, 8
    %s47 = scalar_lea.vmem [#allocation2], %s46
    %v48 = vld [vmem:[%s47] sm:$0xff]
    %v49 = vld [vmem:[%s47 + $0x8] sm:$0xff]
    %v50 = vld [vmem:[%s47 + $0x10] sm:$0xff]
    %v51 = vld [vmem:[%s47 + $0x18] sm:$0xff]
    %v52 = vld [vmem:[%s47 + $0x20] sm:$0xff]
    %v53 = vld [vmem:[%s47 + $0x28] sm:$0xff]
    %v54 = vld [vmem:[%s47 + $0x30] sm:$0xff]
    %v55 = vld [vmem:[%s47 + $0x38] sm:$0xff]
    %v56 = vmul.f32 %v48, 0.5
    %v57 = vmul.f32 %v49, 0.5
    %v58 = vmul.f32 %v50, 0.5
    %v59 = vmul.f32 %v51, 0.5
    %v60 = vmul.f32 %v52, 0.5
    %v61 = vmul.f32 %v53, 0.5
    %v62 = vmul.f32 %v54, 0.5
    %v63 = vmul.f32 %v55, 0.5
    %s64 = sadd.s32 %s23, 24
    %s65 = smul.addr %s64, 8
    %s66 = scalar_lea.vmem [#allocation2], %s65
    %v67 = vld [vmem:[%s66] sm:$0xff]
    %v68 = vld [vmem:[%s66 + $0x8] sm:$0xff]
    %v69 = vld [vmem:[%s66 + $0x10] sm:$0xff]
    %v70 = vld [vmem:[%s66 + $0x18] sm:$0xff]
    %v71 = vld [vmem:[%s66 + $0x20] sm:$0xff]
    %v72 = vld [vmem:[%s66 + $0x28] sm:$0xff]
    %v73 = vld [vmem:[%s66 + $0x30] sm:$0xff]
    %v74 = vld [vmem:[%s66 + $0x38] sm:$0xff]
    %v75 = vmul.f32 %v67, 0.5
    %v76 = vmul.f32 %v68, 0.5
    %v77 = vmul.f32 %v69, 0.5
    %v78 = vmul.f32 %v70, 0.5
    %v79 = vmul.f32 %v71, 0.5
    %v80 = vmul.f32 %v72, 0.5
    %v81 = vmul.f32 %v73, 0.5
    %v82 = vmul.f32 %v74, 0.5
    %v83 = vsub.f32 %v26, %v56
    %v84 = vsub.f32 %v27, %v57
    %v85 = vsub.f32 %v28, %v58
    %v86 = vsub.f32 %v29, %v59
    %v87 = vsub.f32 %v30, %v60
    %v88 = vsub.f32 %v31, %v61
    %v89 = vsub.f32 %v32, %v62
    %v90 = vsub.f32 %v33, %v63
    %s91 = smul.addr %s23, 8
    %s92 = scalar_lea.vmem [#allocation5], %s91
    %93 = vst [vmem:[%s92] sm:$0xff] %v83
    %94 = vst [vmem:[%s92 + $0x8] sm:$0xff] %v84
    %95 = vst [vmem:[%s92 + $0x10] sm:$0xff] %v85
    %96 = vst [vmem:[%s92 + $0x18] sm:$0xff] %v86
    %97 = vst [vmem:[%s92 + $0x20] sm:$0xff] %v87
    %98 = vst [vmem:[%s92 + $0x28] sm:$0xff] %v88
    %99 = vst [vmem:[%s92 + $0x30] sm:$0xff] %v89
    %100 = vst [vmem:[%s92 + $0x38] sm:$0xff] %v90
    %v101 = vsub.f32 %v37, %v75
    %v102 = vsub.f32 %v38, %v76
    %v103 = vsub.f32 %v39, %v77
    %v104 = vsub.f32 %v40, %v78
    %v105 = vsub.f32 %v41, %v79
    %v106 = vsub.f32 %v42, %v80
    %v107 = vsub.f32 %v43, %v81
    %v108 = vsub.f32 %v44, %v82
    %s109 = smul.addr %s34, 8
    %s110 = scalar_lea.vmem [#allocation5], %s109
    %111 = vst [vmem:[%s110] sm:$0xff] %v101
    %112 = vst [vmem:[%s110 + $0x8] sm:$0xff] %v102
    %113 = vst [vmem:[%s110 + $0x10] sm:$0xff] %v103
    %114 = vst [vmem:[%s110 + $0x18] sm:$0xff] %v104
    %115 = vst [vmem:[%s110 + $0x20] sm:$0xff] %v105
    %116 = vst [vmem:[%s110 + $0x28] sm:$0xff] %v106
    %117 = vst [vmem:[%s110 + $0x30] sm:$0xff] %v107
    %118 = vst [vmem:[%s110 + $0x38] sm:$0xff] %v108
    %v119 = vadd.f32 %v26, %v56
    %v120 = vadd.f32 %v27, %v57
    %v121 = vadd.f32 %v28, %v58
    %v122 = vadd.f32 %v29, %v59
    %v123 = vadd.f32 %v30, %v60
    %v124 = vadd.f32 %v31, %v61
    %v125 = vadd.f32 %v32, %v62
    %v126 = vadd.f32 %v33, %v63
    %s127 = smul.addr %s45, 8
    %s128 = scalar_lea.vmem [#allocation5], %s127
    %129 = vst [vmem:[%s128] sm:$0xff] %v119
    %130 = vst [vmem:[%s128 + $0x8] sm:$0xff] %v120
    %131 = vst [vmem:[%s128 + $0x10] sm:$0xff] %v121
    %132 = vst [vmem:[%s128 + $0x18] sm:$0xff] %v122
    %133 = vst [vmem:[%s128 + $0x20] sm:$0xff] %v123
    %134 = vst [vmem:[%s128 + $0x28] sm:$0xff] %v124
    %135 = vst [vmem:[%s128 + $0x30] sm:$0xff] %v125
    %136 = vst [vmem:[%s128 + $0x38] sm:$0xff] %v126
    %v137 = vadd.f32 %v37, %v75
    %v138 = vadd.f32 %v38, %v76
    %v139 = vadd.f32 %v39, %v77
    %v140 = vadd.f32 %v40, %v78
    %v141 = vadd.f32 %v41, %v79
    %v142 = vadd.f32 %v42, %v80
    %v143 = vadd.f32 %v43, %v81
    %v144 = vadd.f32 %v44, %v82
    %s145 = smul.addr %s64, 8
    %s146 = scalar_lea.vmem [#allocation5], %s145
    %147 = vst [vmem:[%s146] sm:$0xff] %v137
    %148 = vst [vmem:[%s146 + $0x8] sm:$0xff] %v138
    %149 = vst [vmem:[%s146 + $0x10] sm:$0xff] %v139
    %150 = vst [vmem:[%s146 + $0x18] sm:$0xff] %v140
    %151 = vst [vmem:[%s146 + $0x20] sm:$0xff] %v141
    %152 = vst [vmem:[%s146 + $0x28] sm:$0xff] %v142
    %153 = vst [vmem:[%s146 + $0x30] sm:$0xff] %v143
    %154 = vst [vmem:[%s146 + $0x38] sm:$0xff] %v144
    %s155 = sadd.s32 %s23, 40
    %s156 = smul.addr %s155, 8
    %s157 = scalar_lea.vmem [#allocation2], %s156
    %v158 = vld [vmem:[%s157] sm:$0xff]
    %v159 = vld [vmem:[%s157 + $0x8] sm:$0xff]
    %v160 = vld [vmem:[%s157 + $0x10] sm:$0xff]
    %v161 = vld [vmem:[%s157 + $0x18] sm:$0xff]
    %v162 = vld [vmem:[%s157 + $0x20] sm:$0xff]
    %v163 = vld [vmem:[%s157 + $0x28] sm:$0xff]
    %v164 = vld [vmem:[%s157 + $0x30] sm:$0xff]
    %v165 = vld [vmem:[%s157 + $0x38] sm:$0xff]
    %s166 = sadd.s32 %s23, 48
    %s167 = smul.addr %s166, 8
    %s168 = scalar_lea.vmem [#allocation2], %s167
    %v169 = vld [vmem:[%s168] sm:$0xff]
    %v170 = vld [vmem:[%s168 + $0x8] sm:$0xff]
    %v171 = vld [vmem:[%s168 + $0x10] sm:$0xff]
    %v172 = vld [vmem:[%s168 + $0x18] sm:$0xff]
    %v173 = vld [vmem:[%s168 + $0x20] sm:$0xff]
    %v174 = vld [vmem:[%s168 + $0x28] sm:$0xff]
    %v175 = vld [vmem:[%s168 + $0x30] sm:$0xff]
    %v176 = vld [vmem:[%s168 + $0x38] sm:$0xff]
    %vm177 = vcmp.gt.f32.partialorder %v169, %v158
    %vm178 = vcmp.gt.f32.partialorder %v170, %v159
    %vm179 = vcmp.gt.f32.partialorder %v171, %v160
    %vm180 = vcmp.gt.f32.partialorder %v172, %v161
    %vm181 = vcmp.gt.f32.partialorder %v173, %v162
    %vm182 = vcmp.gt.f32.partialorder %v174, %v163
    %vm183 = vcmp.gt.f32.partialorder %v175, %v164
    %vm184 = vcmp.gt.f32.partialorder %v176, %v165
    %v185 = vsel %vm177, 1, 0
    %v186 = vsel %vm178, 1, 0
    %v187 = vsel %vm179, 1, 0
    %v188 = vsel %vm180, 1, 0
    %v189 = vsel %vm181, 1, 0
    %v190 = vsel %vm182, 1, 0
    %v191 = vsel %vm183, 1, 0
    %v192 = vsel %vm184, 1, 0
    %v193 = vmax.f32 %v169, %v158
    %v194 = vmax.f32 %v170, %v159
    %v195 = vmax.f32 %v171, %v160
    %v196 = vmax.f32 %v172, %v161
    %v197 = vmax.f32 %v173, %v162
    %v198 = vmax.f32 %v174, %v163
    %v199 = vmax.f32 %v175, %v164
    %v200 = vmax.f32 %v176, %v165
    %s201 = sadd.s32 %s23, 56
    %s202 = smul.addr %s201, 8
    %s203 = scalar_lea.vmem [#allocation2], %s202
    %v204 = vld [vmem:[%s203] sm:$0xff]
    %v205 = vld [vmem:[%s203 + $0x8] sm:$0xff]
    %v206 = vld [vmem:[%s203 + $0x10] sm:$0xff]
    %v207 = vld [vmem:[%s203 + $0x18] sm:$0xff]
    %v208 = vld [vmem:[%s203 + $0x20] sm:$0xff]
    %v209 = vld [vmem:[%s203 + $0x28] sm:$0xff]
    %v210 = vld [vmem:[%s203 + $0x30] sm:$0xff]
    %v211 = vld [vmem:[%s203 + $0x38] sm:$0xff]
    %vm212 = vcmp.gt.f32.partialorder %v204, %v193
    %vm213 = vcmp.gt.f32.partialorder %v205, %v194
    %vm214 = vcmp.gt.f32.partialorder %v206, %v195
    %vm215 = vcmp.gt.f32.partialorder %v207, %v196
    %vm216 = vcmp.gt.f32.partialorder %v208, %v197
    %vm217 = vcmp.gt.f32.partialorder %v209, %v198
    %vm218 = vcmp.gt.f32.partialorder %v210, %v199
    %vm219 = vcmp.gt.f32.partialorder %v211, %v200
    %v220 = vsel %vm212, 2, %v185
    %v221 = vsel %vm213, 2, %v186
    %v222 = vsel %vm214, 2, %v187
    %v223 = vsel %vm215, 2, %v188
    %v224 = vsel %vm216, 2, %v189
    %v225 = vsel %vm217, 2, %v190
    %v226 = vsel %vm218, 2, %v191
    %v227 = vsel %vm219, 2, %v192
    %v228 = vmax.f32 %v204, %v193
    %v229 = vmax.f32 %v205, %v194
    %v230 = vmax.f32 %v206, %v195
    %v231 = vmax.f32 %v207, %v196
    %v232 = vmax.f32 %v208, %v197
    %v233 = vmax.f32 %v209, %v198
    %v234 = vmax.f32 %v210, %v199
    %v235 = vmax.f32 %v211, %v200
    %s236 = sadd.s32 %s23, 64
    %s237 = smul.addr %s236, 8
    %s238 = scalar_lea.vmem [#allocation2], %s237
    %v239 = vld [vmem:[%s238] sm:$0xff]
    %v240 = vld [vmem:[%s238 + $0x8] sm:$0xff]
    %v241 = vld [vmem:[%s238 + $0x10] sm:$0xff]
    %v242 = vld [vmem:[%s238 + $0x18] sm:$0xff]
    %v243 = vld [vmem:[%s238 + $0x20] sm:$0xff]
    %v244 = vld [vmem:[%s238 + $0x28] sm:$0xff]
    %v245 = vld [vmem:[%s238 + $0x30] sm:$0xff]
    %v246 = vld [vmem:[%s238 + $0x38] sm:$0xff]
    %vm247 = vcmp.gt.f32.partialorder %v239, %v228
    %vm248 = vcmp.gt.f32.partialorder %v240, %v229
    %vm249 = vcmp.gt.f32.partialorder %v241, %v230
    %vm250 = vcmp.gt.f32.partialorder %v242, %v231
    %vm251 = vcmp.gt.f32.partialorder %v243, %v232
    %vm252 = vcmp.gt.f32.partialorder %v244, %v233
    %vm253 = vcmp.gt.f32.partialorder %v245, %v234
    %vm254 = vcmp.gt.f32.partialorder %v246, %v235
    %v255 = vsel %vm247, 3, %v220
    %v256 = vsel %vm248, 3, %v221
    %v257 = vsel %vm249, 3, %v222
    %v258 = vsel %vm250, 3, %v223
    %v259 = vsel %vm251, 3, %v224
    %v260 = vsel %vm252, 3, %v225
    %v261 = vsel %vm253, 3, %v226
    %v262 = vsel %vm254, 3, %v227
    %v263 = vmax.f32 %v239, %v228
    %v264 = vmax.f32 %v240, %v229
    %v265 = vmax.f32 %v241, %v230
    %v266 = vmax.f32 %v242, %v231
    %v267 = vmax.f32 %v243, %v232
    %v268 = vmax.f32 %v244, %v233
    %v269 = vmax.f32 %v245, %v234
    %v270 = vmax.f32 %v246, %v235
    %s271 = sadd.s32 %s23, 72
    %s272 = smul.addr %s271, 8
    %s273 = scalar_lea.vmem [#allocation2], %s272
    %v274 = vld [vmem:[%s273] sm:$0xff]
    %v275 = vld [vmem:[%s273 + $0x8] sm:$0xff]
    %v276 = vld [vmem:[%s273 + $0x10] sm:$0xff]
    %v277 = vld [vmem:[%s273 + $0x18] sm:$0xff]
    %v278 = vld [vmem:[%s273 + $0x20] sm:$0xff]
    %v279 = vld [vmem:[%s273 + $0x28] sm:$0xff]
    %v280 = vld [vmem:[%s273 + $0x30] sm:$0xff]
    %v281 = vld [vmem:[%s273 + $0x38] sm:$0xff]
    %vm282 = vcmp.gt.f32.partialorder %v274, %v263
    %vm283 = vcmp.gt.f32.partialorder %v275, %v264
    %vm284 = vcmp.gt.f32.partialorder %v276, %v265
    %vm285 = vcmp.gt.f32.partialorder %v277, %v266
    %vm286 = vcmp.gt.f32.partialorder %v278, %v267
    %vm287 = vcmp.gt.f32.partialorder %v279, %v268
    %vm288 = vcmp.gt.f32.partialorder %v280, %v269
    %vm289 = vcmp.gt.f32.partialorder %v281, %v270
    %v290 = vsel %vm282, 4, %v255
    %v291 = vsel %vm283, 4, %v256
    %v292 = vsel %vm284, 4, %v257
    %v293 = vsel %vm285, 4, %v258
    %v294 = vsel %vm286, 4, %v259
    %v295 = vsel %vm287, 4, %v260
    %v296 = vsel %vm288, 4, %v261
    %v297 = vsel %vm289, 4, %v262
    %v298 = vmax.f32 %v274, %v263
    %v299 = vmax.f32 %v275, %v264
    %v300 = vmax.f32 %v276, %v265
    %v301 = vmax.f32 %v277, %v266
    %v302 = vmax.f32 %v278, %v267
    %v303 = vmax.f32 %v279, %v268
    %v304 = vmax.f32 %v280, %v269
    %v305 = vmax.f32 %v281, %v270
    %s306 = sadd.s32 %s23, 80
    %s307 = smul.addr %s306, 8
    %s308 = scalar_lea.vmem [#allocation2], %s307
    %v309 = vld [vmem:[%s308] sm:$0xff]
    %v310 = vld [vmem:[%s308 + $0x8] sm:$0xff]
    %v311 = vld [vmem:[%s308 + $0x10] sm:$0xff]
    %v312 = vld [vmem:[%s308 + $0x18] sm:$0xff]
    %v313 = vld [vmem:[%s308 + $0x20] sm:$0xff]
    %v314 = vld [vmem:[%s308 + $0x28] sm:$0xff]
    %v315 = vld [vmem:[%s308 + $0x30] sm:$0xff]
    %v316 = vld [vmem:[%s308 + $0x38] sm:$0xff]
    %vm317 = vcmp.gt.f32.partialorder %v309, %v298
    %vm318 = vcmp.gt.f32.partialorder %v310, %v299
    %vm319 = vcmp.gt.f32.partialorder %v311, %v300
    %vm320 = vcmp.gt.f32.partialorder %v312, %v301
    %vm321 = vcmp.gt.f32.partialorder %v313, %v302
    %vm322 = vcmp.gt.f32.partialorder %v314, %v303
    %vm323 = vcmp.gt.f32.partialorder %v315, %v304
    %vm324 = vcmp.gt.f32.partialorder %v316, %v305
    %v325 = vsel %vm317, 5, %v290
    %v326 = vsel %vm318, 5, %v291
    %v327 = vsel %vm319, 5, %v292
    %v328 = vsel %vm320, 5, %v293
    %v329 = vsel %vm321, 5, %v294
    %v330 = vsel %vm322, 5, %v295
    %v331 = vsel %vm323, 5, %v296
    %v332 = vsel %vm324, 5, %v297
    %v333 = vmax.f32 %v309, %v298
    %v334 = vmax.f32 %v310, %v299
    %v335 = vmax.f32 %v311, %v300
    %v336 = vmax.f32 %v312, %v301
    %v337 = vmax.f32 %v313, %v302
    %v338 = vmax.f32 %v314, %v303
    %v339 = vmax.f32 %v315, %v304
    %v340 = vmax.f32 %v316, %v305
    %s341 = sadd.s32 %s23, 88
    %s342 = smul.addr %s341, 8
    %s343 = scalar_lea.vmem [#allocation2], %s342
    %v344 = vld [vmem:[%s343] sm:$0xff]
    %v345 = vld [vmem:[%s343 + $0x8] sm:$0xff]
    %v346 = vld [vmem:[%s343 + $0x10] sm:$0xff]
    %v347 = vld [vmem:[%s343 + $0x18] sm:$0xff]
    %v348 = vld [vmem:[%s343 + $0x20] sm:$0xff]
    %v349 = vld [vmem:[%s343 + $0x28] sm:$0xff]
    %v350 = vld [vmem:[%s343 + $0x30] sm:$0xff]
    %v351 = vld [vmem:[%s343 + $0x38] sm:$0xff]
    %vm352 = vcmp.gt.f32.partialorder %v344, %v333
    %vm353 = vcmp.gt.f32.partialorder %v345, %v334
    %vm354 = vcmp.gt.f32.partialorder %v346, %v335
    %vm355 = vcmp.gt.f32.partialorder %v347, %v336
    %vm356 = vcmp.gt.f32.partialorder %v348, %v337
    %vm357 = vcmp.gt.f32.partialorder %v349, %v338
    %vm358 = vcmp.gt.f32.partialorder %v350, %v339
    %vm359 = vcmp.gt.f32.partialorder %v351, %v340
    %v360 = vsel %vm352, 6, %v325
    %v361 = vsel %vm353, 6, %v326
    %v362 = vsel %vm354, 6, %v327
    %v363 = vsel %vm355, 6, %v328
    %v364 = vsel %vm356, 6, %v329
    %v365 = vsel %vm357, 6, %v330
    %v366 = vsel %vm358, 6, %v331
    %v367 = vsel %vm359, 6, %v332
    %v368 = vmax.f32 %v344, %v333
    %v369 = vmax.f32 %v345, %v334
    %v370 = vmax.f32 %v346, %v335
    %v371 = vmax.f32 %v347, %v336
    %v372 = vmax.f32 %v348, %v337
    %v373 = vmax.f32 %v349, %v338
    %v374 = vmax.f32 %v350, %v339
    %v375 = vmax.f32 %v351, %v340
    %s376 = sadd.s32 %s23, 96
    %s377 = smul.addr %s376, 8
    %s378 = scalar_lea.vmem [#allocation2], %s377
    %v379 = vld [vmem:[%s378] sm:$0xff]
    %v380 = vld [vmem:[%s378 + $0x8] sm:$0xff]
    %v381 = vld [vmem:[%s378 + $0x10] sm:$0xff]
    %v382 = vld [vmem:[%s378 + $0x18] sm:$0xff]
    %v383 = vld [vmem:[%s378 + $0x20] sm:$0xff]
    %v384 = vld [vmem:[%s378 + $0x28] sm:$0xff]
    %v385 = vld [vmem:[%s378 + $0x30] sm:$0xff]
    %v386 = vld [vmem:[%s378 + $0x38] sm:$0xff]
    %vm387 = vcmp.gt.f32.partialorder %v379, %v368
    %vm388 = vcmp.gt.f32.partialorder %v380, %v369
    %vm389 = vcmp.gt.f32.partialorder %v381, %v370
    %vm390 = vcmp.gt.f32.partialorder %v382, %v371
    %vm391 = vcmp.gt.f32.partialorder %v383, %v372
    %vm392 = vcmp.gt.f32.partialorder %v384, %v373
    %vm393 = vcmp.gt.f32.partialorder %v385, %v374
    %vm394 = vcmp.gt.f32.partialorder %v386, %v375
    %v395 = vsel %vm387, 7, %v360
    %v396 = vsel %vm388, 7, %v361
    %v397 = vsel %vm389, 7, %v362
    %v398 = vsel %vm390, 7, %v363
    %v399 = vsel %vm391, 7, %v364
    %v400 = vsel %vm392, 7, %v365
    %v401 = vsel %vm393, 7, %v366
    %v402 = vsel %vm394, 7, %v367
    %v403 = vmax.f32 %v379, %v368
    %v404 = vmax.f32 %v380, %v369
    %v405 = vmax.f32 %v381, %v370
    %v406 = vmax.f32 %v382, %v371
    %v407 = vmax.f32 %v383, %v372
    %v408 = vmax.f32 %v384, %v373
    %v409 = vmax.f32 %v385, %v374
    %v410 = vmax.f32 %v386, %v375
    %s411 = sadd.s32 %s23, 32
    %s412 = smul.addr %s411, 8
    %s413 = scalar_lea.vmem [#allocation2], %s412
    %v414 = vld [vmem:[%s413] sm:$0xff]
    %v415 = vld [vmem:[%s413 + $0x8] sm:$0xff]
    %v416 = vld [vmem:[%s413 + $0x10] sm:$0xff]
    %v417 = vld [vmem:[%s413 + $0x18] sm:$0xff]
    %v418 = vld [vmem:[%s413 + $0x20] sm:$0xff]
    %v419 = vld [vmem:[%s413 + $0x28] sm:$0xff]
    %v420 = vld [vmem:[%s413 + $0x30] sm:$0xff]
    %v421 = vld [vmem:[%s413 + $0x38] sm:$0xff]
    %v422 = vmul.f32 %v403, %v414
    %v423 = vmul.f32 %v404, %v415
    %v424 = vmul.f32 %v405, %v416
    %v425 = vmul.f32 %v406, %v417
    %v426 = vmul.f32 %v407, %v418
    %v427 = vmul.f32 %v408, %v419
    %v428 = vmul.f32 %v409, %v420
    %v429 = vmul.f32 %v410, %v421
    %s430 = smul.addr %s411, 8
    %s431 = scalar_lea.vmem [#allocation5], %s430
    %432 = vst [vmem:[%s431] sm:$0xff] %v422
    %433 = vst [vmem:[%s431 + $0x8] sm:$0xff] %v423
    %434 = vst [vmem:[%s431 + $0x10] sm:$0xff] %v424
    %435 = vst [vmem:[%s431 + $0x18] sm:$0xff] %v425
    %436 = vst [vmem:[%s431 + $0x20] sm:$0xff] %v426
    %437 = vst [vmem:[%s431 + $0x28] sm:$0xff] %v427
    %438 = vst [vmem:[%s431 + $0x30] sm:$0xff] %v428
    %439 = vst [vmem:[%s431 + $0x38] sm:$0xff] %v429
    %v440 = vcvt.s32.f32 %v395
    %v441 = vcvt.s32.f32 %v396
    %v442 = vcvt.s32.f32 %v397
    %v443 = vcvt.s32.f32 %v398
    %v444 = vcvt.s32.f32 %v399
    %v445 = vcvt.s32.f32 %v400
    %v446 = vcvt.s32.f32 %v401
    %v447 = vcvt.s32.f32 %v402
    %s448 = smul.addr %s155, 8
    %s449 = scalar_lea.vmem [#allocation5], %s448
    %450 = vst [vmem:[%s449] sm:$0xff] %v440
    %451 = vst [vmem:[%s449 + $0x8] sm:$0xff] %v441
    %452 = vst [vmem:[%s449 + $0x10] sm:$0xff] %v442
    %453 = vst [vmem:[%s449 + $0x18] sm:$0xff] %v443
    %454 = vst [vmem:[%s449 + $0x20] sm:$0xff] %v444
    %455 = vst [vmem:[%s449 + $0x28] sm:$0xff] %v445
    %456 = vst [vmem:[%s449 + $0x30] sm:$0xff] %v446
    %457 = vst [vmem:[%s449 + $0x38] sm:$0xff] %v447
    // Predicated region
    $region10: #{tpu_custom_call.1} parent=1 // pred_check
      _
    $region11: #{tpu_custom_call.1} parent=1 // pred_check_branch
      %459 = sbr.rel (0) target = $region13
    $region12: #{tpu_custom_call.1} parent=1 // pred_region
      %s461 = ssub.s32 6144, 6144
      %462 = vsyncadd [#allocation4], %s461
      %s463 = sshll.u32 [#allocation5], 4
      %s464 = int_to_ptr.vmem [resolvable:$true] %s463
      %469 = dma.vmem_to_hbm [thread:$0]  %s464, 6144, %s1, [#allocation4], 512, 512, 32
    $region13: #{tpu_custom_call.1} parent=1 // pred_fallthru
      _
    // Predicated region
    $region14: #{tpu_custom_call.1} parent=1 // pred_check
      _
    $region15: #{tpu_custom_call.1} parent=1 // pred_check_branch
      %471 = sbr.rel (0) target = $region17
    $region16: #{tpu_custom_call.1} parent=1 // pred_region
      %472 = dma.done [#allocation4], 6144
    $region17: #{tpu_custom_call.1} parent=1 // pred_fallthru
      _
    %473 = vsyncpa [#allocation3], 1
    %474 = vsyncpa [#allocation4], 1

</llo_original>
